<compile_context>
chip_gen: v7x
topology: tpu7x:2x2x1
jax: 0.10.0
libtpu: 0.0.40
codegen_flags: <defaults>
</compile_context>

<pallas_src>
import functools

import jax
import jax.numpy as jnp
from jax.experimental import pallas as pl
from jax.experimental.pallas import tpu as pltpu


def _round_up(x, m):
    return (x + m - 1) // m * m


def bigram_ce_kernel(x_ref, y_ref, table_ref, *out_refs,
                     n_valid, vocab, tile_n, store_logits):
    """One row-tile of the fused embedding-gather + cross-entropy forward.

    x_ref      : (TN, 1)      int32   token ids for this tile
    y_ref      : (TN, 1)      int32   target ids for this tile
    table_ref  : (Vpad, Vpad) float32 padded table; column Vpad-1 holds
                                      lse(table_row) precomputed on the host
    out_refs   : [logits_ref (TN, V)] + [lpart_ref (1, 1, 128)]
    """
    if store_logits:
        logits_ref, lpart_ref = out_refs
    else:
        (lpart_ref,) = out_refs

    pid = pl.program_id(0)

    x = x_ref[...]                      # (TN, 1) int32
    y = y_ref[...]                      # (TN, 1) int32
    table = table_ref[...]              # (Vpad, Vpad) float32 (VMEM resident)

    tn = x.shape[0]
    vpad = table.shape[0]
    lse_col = vpad - 1                  # spare padded column holding lse rows

    # Column iota built once, reused for all one-hot compares.
    col = jax.lax.broadcasted_iota(jnp.int32, (tn, vpad), 1)

    # Embedding gather (and lse gather, via the stashed column) as a single
    # MXU matmul.  Precision pinned so f32 parity is compiler-stable; the MXU
    # has large slack here so the extra passes are free.
    onehot_x = (col == x).astype(jnp.float32)                        # (TN, Vpad)
    logits_full = jnp.dot(onehot_x, table,
                          precision=jax.lax.Precision.HIGHEST,
                          preferred_element_type=jnp.float32)        # (TN, Vpad)

    if store_logits:
        # True-width (masked-lane) store: (TN, V) — avoids padded writeback.
        logits_ref[...] = logits_full[:, :vocab]

    # Padded-row mask.
    row = jax.lax.broadcasted_iota(jnp.int32, (tn, 1), 0) + pid * tile_n
    valid = (row < n_valid).astype(jnp.float32)                      # (TN, 1)

    # Per-token CE term: lse[x_i] - table[x_i, y_i]
    #   = sum_{r,c} counts[r,c] * table[r,c]
    # with counts = onehot(x)^T @ (onehot(lse_col) - onehot(y)), masked.
    # This turns the per-token cross-lane reduce into an MXU reduction plus a
    # single small (Vpad,Vpad) reduce.  Operand entries are exactly 0/+-1, so
    # default matmul precision is exact (f32 accumulation).
    delta = (jnp.where(col == lse_col, 1.0, 0.0)
             - jnp.where(col == y, 1.0, 0.0)) * valid                # (TN, Vpad)
    counts = jax.lax.dot_general(
        onehot_x, delta,
        dimension_numbers=(((0,), (0,)), ((), ())),                  # contract tokens
        preferred_element_type=jnp.float32)                          # (Vpad, Vpad)

    part = jnp.sum(counts * table)                                   # scalar
    lpart_ref[...] = jnp.zeros(lpart_ref.shape, jnp.float32) + part


def bigram_forward(xb, yb, table, tile_n=2048, return_logits=True):
    """xb, yb: (B, T) int token ids (yb may be None); table: (V, V) float32.

    Returns (logits of shape (B*T, V) or None, mean cross-entropy loss or None),
    matching Bigrammodel.forward(xb, yb)."""
    B, T = xb.shape
    V = table.shape[0]
    N = B * T

    # +1 guarantees a spare padded column (>= V) to stash the per-row lse.
    Vpad = _round_up(V + 1, 128)
    # Cap TN so there are >= 2 grid steps: keeps both v7x TensorCores busy via
    # the "parallel" grid axis (harmless on single-TC v5e/v6e).
    TN = min(tile_n, _round_up(max((N + 1) // 2, 8), 8))
    Npad = _round_up(N, TN)
    num_tiles = Npad // TN

    x_flat = xb.reshape(-1).astype(jnp.int32)
    y_src = yb if yb is not None else jnp.zeros_like(xb)
    y_flat = y_src.reshape(-1).astype(jnp.int32)
    x_ids = jnp.pad(x_flat, (0, Npad - N)).reshape(Npad, 1)
    y_ids = jnp.pad(y_flat, (0, Npad - N)).reshape(Npad, 1)

    # Hoisted, computed once: per-row logsumexp of the (tiny) table, stashed in
    # padded column Vpad-1 so the in-kernel matmul gathers it alongside logits.
    table_f32 = table.astype(jnp.float32)
    lse_rows = jax.nn.logsumexp(table_f32, axis=-1)                   # (V,)
    table_pad = jnp.zeros((Vpad, Vpad), jnp.float32)
    table_pad = table_pad.at[:V, :V].set(table_f32)
    table_pad = table_pad.at[:V, Vpad - 1].set(lse_rows)

    kernel = functools.partial(bigram_ce_kernel, n_valid=N, vocab=V,
                               tile_n=TN, store_logits=return_logits)

    out_shapes = []
    out_specs = []
    if return_logits:
        out_shapes.append(jax.ShapeDtypeStruct((Npad, V), jnp.float32))
        out_specs.append(pl.BlockSpec((TN, V), lambda i: (i, 0)))
    out_shapes.append(jax.ShapeDtypeStruct((num_tiles, 1, 128), jnp.float32))
    out_specs.append(pl.BlockSpec((1, 1, 128), lambda i: (i, 0, 0)))

    cost = pl.CostEstimate(
        flops=2 * (2 * Npad * Vpad * Vpad),          # gather matmul + count matmul
        transcendentals=0,                           # lse hoisted to the host
        bytes_accessed=(2 * Npad * 4                 # x, y ids
                        + Vpad * Vpad * 4            # resident table
                        + (Npad * V * 4 if return_logits else 0)
                        + num_tiles * 128 * 4),      # partial-loss writeback
    )

    outs = pl.pallas_call(
        kernel,
        out_shape=tuple(out_shapes),
        grid=(num_tiles,),
        in_specs=[
            pl.BlockSpec((TN, 1), lambda i: (i, 0)),          # x ids (tiled)
            pl.BlockSpec((TN, 1), lambda i: (i, 0)),          # y ids (tiled)
            pl.BlockSpec((Vpad, Vpad), lambda i: (0, 0)),     # table (resident)
        ],
        out_specs=tuple(out_specs),
        compiler_params=pltpu.CompilerParams(
            dimension_semantics=("parallel",),
            vmem_limit_bytes=48 * 1024 * 1024,   # live set < 8 MiB at TN=2048
        ),
        cost_estimate=cost,
    )(x_ids, y_ids, table_pad)

    if return_logits:
        logits_pad, lparts = outs
        logits = logits_pad[:N, :]
    else:
        (lparts,) = outs
        logits = None

    loss = None if yb is None else jnp.sum(lparts[:, 0, 0]) / jnp.float32(N)
    return logits, loss


if __name__ == "__main__":
    vocab_size = 16
    key = jax.random.PRNGKey(0)
    k_tab, k_x, k_y = jax.random.split(key, 3)

    # nn.Embedding default init: N(0, 1)
    table = jax.random.normal(k_tab, (vocab_size, vocab_size), dtype=jnp.float32)

    def reference(xb, yb, table):
        ref_logits = table[xb.reshape(-1)]
        ref_loss = jnp.mean(
            jax.nn.logsumexp(ref_logits, axis=-1)
            - jnp.take_along_axis(ref_logits, yb.reshape(-1, 1), axis=-1)[:, 0])
        return ref_logits, ref_loss

    # Case 1: small shape consistent with the module (B=2, T=8) — 2 tiny tiles.
    B, T = 2, 8
    xb = jax.random.randint(k_x, (B, T), 0, vocab_size, dtype=jnp.int32)
    yb = jax.random.randint(k_y, (B, T), 0, vocab_size, dtype=jnp.int32)
    logits, loss = bigram_forward(xb, yb, table)
    jax.block_until_ready((logits, loss))
    ref_logits, ref_loss = reference(xb, yb, table)
    assert logits.shape == (B * T, vocab_size), "logits shape mismatch"
    assert jnp.allclose(logits, ref_logits, atol=1e-5), "logits mismatch"
    assert jnp.allclose(loss, ref_loss, atol=1e-5), "loss mismatch"

    # Case 2: multi-tile grid (N=256, TN=128 -> 2 tiles) exercises the tiled
    # row axis, row masking, and host-side partial-loss reduction.
    B2, T2 = 4, 64
    xb2 = jax.random.randint(jax.random.PRNGKey(1), (B2, T2), 0, vocab_size,
                             dtype=jnp.int32)
    yb2 = jax.random.randint(jax.random.PRNGKey(2), (B2, T2), 0, vocab_size,
                             dtype=jnp.int32)
    logits2, loss2 = bigram_forward(xb2, yb2, table, tile_n=128)
    jax.block_until_ready((logits2, loss2))
    ref_logits2, ref_loss2 = reference(xb2, yb2, table)
    assert jnp.allclose(logits2, ref_logits2, atol=1e-5), "tiled logits mismatch"
    assert jnp.allclose(loss2, ref_loss2, atol=1e-5), "tiled loss mismatch"

    # Case 3: loss-only path (skips the logits output entirely).
    none_logits, loss3 = bigram_forward(xb2, yb2, table, tile_n=128,
                                        return_logits=False)
    jax.block_until_ready(loss3)
    assert none_logits is None, "return_logits=False should not return logits"
    assert jnp.allclose(loss3, ref_loss2, atol=1e-5), "loss-only mismatch"

    # Case 4: yb=None path (matches Bigrammodel.forward(xb) -> (logits, None)).
    logits4, loss4 = bigram_forward(xb, None, table)
    jax.block_until_ready(logits4)
    assert loss4 is None, "loss should be None when yb is None"
    assert jnp.allclose(logits4, ref_logits, atol=1e-5), "no-target logits mismatch"

    print("KERNEL_OK")
</pallas_src>

<mosaic_0001>
module attributes {stable_mosaic.version = 11 : i64} {
  func.func @bigram_ce_kernel(%arg0: i32, %arg1: memref<8x1xi32, #tpu.memory_space<vmem>>, %arg2: memref<8x1xi32, #tpu.memory_space<vmem>>, %arg3: memref<128x128xf32, #tpu.memory_space<vmem>>, %arg4: memref<8x16xf32, #tpu.memory_space<vmem>>, %arg5: memref<1x1x128xf32, #tpu.memory_space<vmem>>) attributes {dimension_semantics = [#tpu.dimension_semantics<parallel>], iteration_bounds = array<i64: 2>, scalar_prefetch = 0 : i64, scratch_operands = 0 : i64, tpu.core_type = #tpu.core_type<tc>, window_params = [{transform_indices = @transform_0, window_bounds = array<i64: 8, 1>}, {transform_indices = @transform_1, window_bounds = array<i64: 8, 1>}, {pipeline_mode = #tpu.pipeline_mode<synchronous>, transform_indices = @transform_2, window_bounds = array<i64: 128, 128>}, {transform_indices = @transform_3, window_bounds = array<i64: 8, 16>}, {transform_indices = @transform_4, window_bounds = array<i64: 1, 1, 128>}]} {
    %c0 = arith.constant 0 : index
    %c0_0 = arith.constant 0 : index
    %0 = vector.load %arg1[%c0, %c0_0] : memref<8x1xi32, #tpu.memory_space<vmem>>, vector<8x1xi32>
    %c0_1 = arith.constant 0 : index
    %c0_2 = arith.constant 0 : index
    %1 = vector.load %arg2[%c0_1, %c0_2] : memref<8x1xi32, #tpu.memory_space<vmem>>, vector<8x1xi32>
    %c0_3 = arith.constant 0 : index
    %c0_4 = arith.constant 0 : index
    %2 = vector.load %arg3[%c0_3, %c0_4] : memref<128x128xf32, #tpu.memory_space<vmem>>, vector<128x128xf32>
    %3 = tpu.iota {dimensions = array<i32: 1>} : vector<8x128xi32>
    %4 = vector.broadcast %0 : vector<8x1xi32> to vector<8x128xi32>
    %5 = arith.cmpi eq, %3, %4 : vector<8x128xi32>
    %6 = arith.extui %5 : vector<8x128xi1> to vector<8x128xi32>
    %7 = arith.sitofp %6 : vector<8x128xi32> to vector<8x128xf32>
    %cst = arith.constant dense<0.000000e+00> : vector<8x128xf32>
    %8 = tpu.matmul %7, %2, %cst {dimension_numbers = #tpu.dot_dimension_numbers<[1], [0], [0], [1], [0, 0, 1, 1], [], []>, precision = #tpu.contract_precision<fp32>} : vector<8x128xf32>, vector<128x128xf32>, vector<8x128xf32> -> vector<8x128xf32>
    %9 = vector.extract_strided_slice %8 {offsets = [0, 0], sizes = [8, 16], strides = [1, 1]} : vector<8x128xf32> to vector<8x16xf32>
    %c0_5 = arith.constant 0 : index
    %c0_6 = arith.constant 0 : index
    %10 = vector.load %arg4[%c0_5, %c0_6] : memref<8x16xf32, #tpu.memory_space<vmem>>, vector<8x16xf32>
    tpu.vector_store %arg4[%c0_5, %c0_6], %9 {strides = array<i32>} : memref<8x16xf32, #tpu.memory_space<vmem>>, vector<8x16xf32>,
    %11 = tpu.iota {dimensions = array<i32: 0>} : vector<8x1xi32>
    %c8_i32 = arith.constant 8 : i32
    %12 = arith.muli %arg0, %c8_i32 : i32
    %13 = vector.broadcast %12 : i32 to vector<8x1xi32>
    %14 = arith.addi %11, %13 : vector<8x1xi32>
    %c16_i32 = arith.constant 16 : i32
    %15 = vector.broadcast %c16_i32 : i32 to vector<8x1xi32>
    %16 = arith.cmpi slt, %14, %15 : vector<8x1xi32>
    %17 = arith.extui %16 : vector<8x1xi1> to vector<8x1xi32>
    %18 = arith.sitofp %17 : vector<8x1xi32> to vector<8x1xf32>
    %c127_i32 = arith.constant 127 : i32
    %19 = vector.broadcast %c127_i32 : i32 to vector<8x128xi32>
    %20 = arith.cmpi eq, %3, %19 : vector<8x128xi32>
    %cst_7 = arith.constant 1.000000e+00 : f32
    %cst_8 = arith.constant 0.000000e+00 : f32
    %21 = vector.broadcast %cst_7 : f32 to vector<8x128xf32>
    %22 = vector.broadcast %cst_8 : f32 to vector<8x128xf32>
    %23 = arith.select %20, %21, %22 : vector<8x128xi1>, vector<8x128xf32>
    %24 = vector.broadcast %1 : vector<8x1xi32> to vector<8x128xi32>
    %25 = arith.cmpi eq, %3, %24 : vector<8x128xi32>
    %cst_9 = arith.constant 1.000000e+00 : f32
    %cst_10 = arith.constant 0.000000e+00 : f32
    %26 = vector.broadcast %cst_9 : f32 to vector<8x128xf32>
    %27 = vector.broadcast %cst_10 : f32 to vector<8x128xf32>
    %28 = arith.select %25, %26, %27 : vector<8x128xi1>, vector<8x128xf32>
    %29 = arith.subf %23, %28 : vector<8x128xf32>
    %30 = vector.broadcast %18 : vector<8x1xf32> to vector<8x128xf32>
    %31 = arith.mulf %29, %30 : vector<8x128xf32>
    %cst_11 = arith.constant dense<0.000000e+00> : vector<128x128xf32>
    %32 = tpu.matmul %7, %31, %cst_11 {dimension_numbers = #tpu.dot_dimension_numbers<[0], [0], [1], [1], [0, 1, 1, 1], [], []>} : vector<8x128xf32>, vector<8x128xf32>, vector<128x128xf32> -> vector<128x128xf32>
    %33 = arith.mulf %32, %2 : vector<128x128xf32>
    %34 = vector.shape_cast %33 : vector<128x128xf32> to vector<1x128x128xf32>
    %cst_12 = arith.constant dense<0.000000e+00> : vector<1xf32>
    %35 = vector.multi_reduction <add>, %34, %cst_12 [1, 2] : vector<1x128x128xf32> to vector<1xf32>
    %36 = vector.shape_cast %35 : vector<1xf32> to vector<1x1x1xf32>
    %37 = vector.extract %36[0, 0, 0] : f32 from vector<1x1x1xf32>
    %cst_13 = arith.constant 0.000000e+00 : f32
    %38 = vector.broadcast %cst_13 : f32 to vector<1x1x128xf32>
    %39 = vector.broadcast %37 : f32 to vector<1x1x128xf32>
    %40 = arith.addf %38, %39 : vector<1x1x128xf32>
    %c0_14 = arith.constant 0 : index
    %c0_15 = arith.constant 0 : index
    %c0_16 = arith.constant 0 : index
    %41 = vector.load %arg5[%c0_14, %c0_15, %c0_16] : memref<1x1x128xf32, #tpu.memory_space<vmem>>, vector<1x1x128xf32>
    tpu.vector_store %arg5[%c0_14, %c0_15, %c0_16], %40 {strides = array<i32>} : memref<1x1x128xf32, #tpu.memory_space<vmem>>, vector<1x1x128xf32>,
    return
  }
  func.func @transform_0(%arg0: i32) -> (i32, i32) {
    %c0_i32 = arith.constant 0 : i32
    %c0_i32_0 = arith.constant 0 : i32
    return %arg0, %c0_i32 : i32, i32
  }
  func.func @transform_1(%arg0: i32) -> (i32, i32) {
    %c0_i32 = arith.constant 0 : i32
    %c0_i32_0 = arith.constant 0 : i32
    return %arg0, %c0_i32 : i32, i32
  }
  func.func @transform_2(%arg0: i32) -> (i32, i32) {
    %c0_i32 = arith.constant 0 : i32
    %c0_i32_0 = arith.constant 0 : i32
    %c0_i32_1 = arith.constant 0 : i32
    return %c0_i32, %c0_i32_0 : i32, i32
  }
  func.func @transform_3(%arg0: i32) -> (i32, i32) {
    %c0_i32 = arith.constant 0 : i32
    %c0_i32_0 = arith.constant 0 : i32
    return %arg0, %c0_i32 : i32, i32
  }
  func.func @transform_4(%arg0: i32) -> (i32, i32, i32) {
    %c0_i32 = arith.constant 0 : i32
    %c0_i32_0 = arith.constant 0 : i32
    %c0_i32_1 = arith.constant 0 : i32
    return %arg0, %c0_i32, %c0_i32_0 : i32, i32, i32
  }
}

</mosaic_0001>

<llo_original>
// kernel: tpu_custom_call.1
$region0: #{tpu_custom_call.1}
  #allocation0 [shape = 'u32[]', space=smem, size = 0x4, offset = 0x4, fixed_abs, tag = 'smem constant byte address 0x4 - core index']
  #allocation1 [shape = 'u32[144,128]{1,0:T(1,128)}', space=vmem, size = 0x12000, scoped, tag = 'internal scratch']
  %s0 = inlined_call_operand.vmem [shape: s32[16,1], index: 0, kind: input, shape index: {}]
  %s1 = inlined_call_operand.vmem [shape: s32[16,1], index: 1, kind: input, shape index: {}]
  %s2 = inlined_call_operand.hbm [shape: f32[128,128], index: 2, kind: input, shape index: {}]
  %s3 = inlined_call_operand.hbm [shape: f32[16,16], index: 3, kind: output, shape index: {0}]
  %s4 = inlined_call_operand.hbm [shape: f32[2,1,128], index: 4, kind: output, shape index: {1}]
  %5 = xla_tuple %s3, %s4
  %s6 = sld [smem:[#allocation0]]
  $region57: #{tpu_custom_call.1} parent=0
    _
  %s8 = ssub.s32 1, %s6
  %s9 = scalar_select 0, %s8, %s6
  $region1: #{tpu_custom_call.1} parent=0
    #allocation2 [shape = 'u8[65536]{0}', space=vmem, size = 0x10000, scoped, tag = 'input window, operand 2, single buffered']
    #allocation3 [shape = 's32[2]{0}', space=sflag, size = 0x8, scoped, tag = 'scoped memory for tpu_custom_call.1']
    #allocation4 [shape = 's32[2]{0}', space=sflag, size = 0x8, scoped, tag = 'scoped memory for tpu_custom_call.1']
    #allocation5 [shape = 'u8[8192]{0}', space=vmem, size = 0x2000, scoped, tag = 'output window, operand 0']
    #allocation6 [shape = 'u8[1024]{0}', space=vmem, size = 0x400, scoped, tag = 'output window, operand 1']
    #allocation7 [shape = 's32[2]{0}', space=sflag, size = 0x8, scoped, tag = 'scoped memory for tpu_custom_call.1']
    %10 = vsyncpa [#allocation3], 0
    %11 = vsyncpa [#allocation4], 0
    %s12 = scalar_lea.sflag [#allocation4], 1
    %13 = vsyncpa %s12, 0
    %14 = vsyncpa [#allocation7], 0
    %s15 = scalar_lea.sflag [#allocation7], 1
    %16 = vsyncpa %s15, 0
    loop: start=0, step=1, limit=4
    $region2: #{tpu_custom_call.1} parent=1 // loop_pre_header
      _
    $region3: #{tpu_custom_call.1} parent=1 // loop_header
      %s18 = sphi 0, %s22
      %p19 = scmp.ge.s32.totalorder %s18, 4
      %s28 = sphi 0, %s30
      %s31 = sphi 0, %s28
      %s32 = sphi 0, %s31
      %s48 = sphi 0, %s32
      %s54 = sphi 0, %s56
      %s57 = sphi 0, %s54
      %s58 = sphi 0, %s57
      %s74 = sphi 0, %s58
      %s78 = sphi 0, %s78
      %s80 = sphi 0, %s78
      %s81 = sphi 0, %s80
      %s95 = sphi 0, %s81
      %s101 = sphi 0, %s103
      %s104 = sphi 0, %s101
      %s105 = sphi 0, %s104
      %s121 = sphi 0, %s105
      %s127 = sphi 0, %s129
      %s130 = sphi 0, %s127
      %s131 = sphi 0, %s130
      %s147 = sphi 0, %s131
    $region4: #{tpu_custom_call.1} parent=1 // loop_header_branch
      %21 = sbr.rel (%p19) target = $region8
    $region5: #{tpu_custom_call.1} parent=1 // loop_body
      %s23 = ssub.s32 %s18, 1
      %s24 = ssub.s32 %s18, 2
      %s25 = sadd.s32 %s18, 1
      %s26 = ssub.s32 %s18, %s25
      %p27 = scmp.eq.s32.totalorder %s26, 0
      %s29 = sadd.s32 %s28, 1
      %s30 = scalar_select %p27, %s28, %s29
      %p33 = pneg %p27
      %p34 = scmp.eq.s32.totalorder %s18, 1
      %p35 = por %p33, %p34
      %p36 = scmp.ne.s32.totalorder %s28, %s31
      %p37 = scmp.eq.s32.totalorder %s18, 0
      %p38 = por %p36, %p37
      %p39 = scmp.ne.s32.totalorder %s28, %s31
      %p40 = scmp.eq.s32.totalorder %s23, 1
      %p41 = por %p39, %p40
      %p42 = scmp.ne.s32.totalorder %s31, %s32
      %p43 = scmp.eq.s32.totalorder %s23, 0
      %p44 = por %p42, %p43
      %p45 = scmp.ne.s32.totalorder %s31, %s32
      %p46 = scmp.eq.s32.totalorder %s24, 1
      %p47 = por %p45, %p46
      %p49 = scmp.ne.s32.totalorder %s32, %s48
      %p50 = scmp.eq.s32.totalorder %s24, 0
      %p51 = por %p49, %p50
      %s52 = ssub.s32 %s18, %s25
      %p53 = scmp.eq.s32.totalorder %s52, 0
      %s55 = sadd.s32 %s54, 1
      %s56 = scalar_select %p53, %s54, %s55
      %p59 = pneg %p53
      %p60 = scmp.eq.s32.totalorder %s18, 1
      %p61 = por %p59, %p60
      %p62 = scmp.ne.s32.totalorder %s54, %s57
      %p63 = scmp.eq.s32.totalorder %s18, 0
      %p64 = por %p62, %p63
      %p65 = scmp.ne.s32.totalorder %s54, %s57
      %p66 = scmp.eq.s32.totalorder %s23, 1
      %p67 = por %p65, %p66
      %p68 = scmp.ne.s32.totalorder %s57, %s58
      %p69 = scmp.eq.s32.totalorder %s23, 0
      %p70 = por %p68, %p69
      %p71 = scmp.ne.s32.totalorder %s57, %s58
      %p72 = scmp.eq.s32.totalorder %s24, 1
      %p73 = por %p71, %p72
      %p75 = scmp.ne.s32.totalorder %s58, %s74
      %p76 = scmp.eq.s32.totalorder %s24, 0
      %p77 = por %p75, %p76
      %s79 = sadd.s32 %s78, 1
      %p82 = scmp.eq.s32.totalorder %s18, 1
      %p83 = scmp.ne.s32.totalorder %s78, %s80
      %p84 = scmp.eq.s32.totalorder %s18, 0
      %p85 = por %p83, %p84
      %p86 = scmp.ne.s32.totalorder %s78, %s80
      %p87 = scmp.eq.s32.totalorder %s23, 1
      %p88 = por %p86, %p87
      %p89 = scmp.ne.s32.totalorder %s80, %s81
      %p90 = scmp.eq.s32.totalorder %s23, 0
      %p91 = por %p89, %p90
      %p92 = scmp.ne.s32.totalorder %s80, %s81
      %p93 = scmp.eq.s32.totalorder %s24, 1
      %p94 = por %p92, %p93
      %p96 = scmp.ne.s32.totalorder %s81, %s95
      %p97 = scmp.eq.s32.totalorder %s24, 0
      %p98 = por %p96, %p97
      %s99 = ssub.s32 %s18, %s25
      %p100 = scmp.eq.s32.totalorder %s99, 0
      %s102 = sadd.s32 %s101, 1
      %s103 = scalar_select %p100, %s101, %s102
      %p106 = pneg %p100
      %p107 = scmp.eq.s32.totalorder %s18, 1
      %p108 = por %p106, %p107
      %p109 = scmp.ne.s32.totalorder %s101, %s104
      %p110 = scmp.eq.s32.totalorder %s18, 0
      %p111 = por %p109, %p110
      %p112 = scmp.ne.s32.totalorder %s101, %s104
      %p113 = scmp.eq.s32.totalorder %s23, 1
      %p114 = por %p112, %p113
      %p115 = scmp.ne.s32.totalorder %s104, %s105
      %p116 = scmp.eq.s32.totalorder %s23, 0
      %p117 = por %p115, %p116
      %p118 = scmp.ne.s32.totalorder %s104, %s105
      %p119 = scmp.eq.s32.totalorder %s24, 1
      %p120 = por %p118, %p119
      %p122 = scmp.ne.s32.totalorder %s105, %s121
      %p123 = scmp.eq.s32.totalorder %s24, 0
      %p124 = por %p122, %p123
      %s125 = ssub.s32 %s18, %s25
      %p126 = scmp.eq.s32.totalorder %s125, 0
      %s128 = sadd.s32 %s127, 1
      %s129 = scalar_select %p126, %s127, %s128
      %p132 = pneg %p126
      %p133 = scmp.eq.s32.totalorder %s18, 1
      %p134 = por %p132, %p133
      %p135 = scmp.ne.s32.totalorder %s127, %s130
      %p136 = scmp.eq.s32.totalorder %s18, 0
      %p137 = por %p135, %p136
      %p138 = scmp.ne.s32.totalorder %s127, %s130
      %p139 = scmp.eq.s32.totalorder %s23, 1
      %p140 = por %p138, %p139
      %p141 = scmp.ne.s32.totalorder %s130, %s131
      %p142 = scmp.eq.s32.totalorder %s23, 0
      %p143 = por %p141, %p142
      %p144 = scmp.ne.s32.totalorder %s130, %s131
      %p145 = scmp.eq.s32.totalorder %s24, 1
      %p146 = por %p144, %p145
      %p148 = scmp.ne.s32.totalorder %s131, %s147
      %p149 = scmp.eq.s32.totalorder %s24, 0
      %p150 = por %p148, %p149
      %p151 = scmp.le.s32.totalorder 1, %s18
      %p152 = scmp.lt.s32.totalorder %s18, 3
      %p153 = pnand %p151, %p152
      %p154 = pneg %p153
      // Predicated region
      $region9: #{tpu_custom_call.1} parent=5 // pred_check
        _
      $region10: #{tpu_custom_call.1} parent=5 // pred_check_branch
        %156 = sbr.rel (%p153) target = $region12
      $region11: #{tpu_custom_call.1} parent=5 // pred_region
        %s157 = ssub.s32 %s18, 1
        // Predicated region
        $region13: #{tpu_custom_call.1} parent=11 // pred_check
          %p158 = pneg %p91
        $region14: #{tpu_custom_call.1} parent=11 // pred_check_branch
          %160 = sbr.rel (%p158) target = $region16
        $region15: #{tpu_custom_call.1} parent=11 // pred_region
          %s162 = ssub.s32 2048, 2048
          %163 = vsyncadd [#allocation3], %s162
          %s164 = sshll.u32 [#allocation2], 4
          %s165 = int_to_ptr.vmem [resolvable:$true] %s164
          %170 = dma.hbm_to_vmem [thread:$0]  %s2, 2048, %s165, [#allocation3], 128, 128, 8
        $region16: #{tpu_custom_call.1} parent=11 // pred_fallthru
          _
      $region12: #{tpu_custom_call.1} parent=5 // pred_fallthru
        _
      %p171 = scmp.lt.s32.totalorder %s18, 2
      // Predicated region
      $region17: #{tpu_custom_call.1} parent=5 // pred_check
        %p172 = pneg %p171
      $region18: #{tpu_custom_call.1} parent=5 // pred_check_branch
        %174 = sbr.rel (%p172) target = $region20
      $region19: #{tpu_custom_call.1} parent=5 // pred_region
        // Predicated region
        $region21: #{tpu_custom_call.1} parent=19 // pred_check
          %p175 = pneg %p38
        $region22: #{tpu_custom_call.1} parent=19 // pred_check_branch
          %177 = sbr.rel (%p175) target = $region24
        $region23: #{tpu_custom_call.1} parent=19 // pred_region
          %p178 = scmp.lt.s32.totalorder %s18, 1
          %s179 = scalar_select %p178, %s18, 1
          %s180 = smul.addr %s179, 8
          %s181 = scalar_lea.vmem %s0, %s180
        $region24: #{tpu_custom_call.1} parent=19 // pred_fallthru
          _
        // Predicated region
        $region25: #{tpu_custom_call.1} parent=19 // pred_check
          %p182 = pneg %p64
        $region26: #{tpu_custom_call.1} parent=19 // pred_check_branch
          %184 = sbr.rel (%p182) target = $region28
        $region27: #{tpu_custom_call.1} parent=19 // pred_region
          %p185 = scmp.lt.s32.totalorder %s18, 1
          %s186 = scalar_select %p185, %s18, 1
          %s187 = smul.addr %s186, 8
          %s188 = scalar_lea.vmem %s1, %s187
        $region28: #{tpu_custom_call.1} parent=19 // pred_fallthru
          _
      $region20: #{tpu_custom_call.1} parent=5 // pred_fallthru
        _
      %p189 = scmp.le.s32.totalorder 1, %s18
      %p190 = scmp.lt.s32.totalorder %s18, 3
      %p191 = pnand %p189, %p190
      %p192 = pneg %p191
      // Predicated region
      $region29: #{tpu_custom_call.1} parent=5 // pred_check
        _
      $region30: #{tpu_custom_call.1} parent=5 // pred_check_branch
        %194 = sbr.rel (%p191) target = $region32
      $region31: #{tpu_custom_call.1} parent=5 // pred_region
        %s195 = ssub.s32 %s18, 1
        // Predicated region
        $region33: #{tpu_custom_call.1} parent=31 // pred_check
          %p196 = pneg %p91
        $region34: #{tpu_custom_call.1} parent=31 // pred_check_branch
          %198 = sbr.rel (%p196) target = $region36
        $region35: #{tpu_custom_call.1} parent=31 // pred_region
          %199 = dma.done [#allocation3], 2048
        $region36: #{tpu_custom_call.1} parent=31 // pred_fallthru
          _
        %p200 = scmp.lt.s32.totalorder %s23, 1
        %s201 = scalar_select %p200, %s23, 1
        %s202 = smul.addr %s201, 8
        %s203 = scalar_lea.vmem %s0, %s202
        %p204 = pneg %p44
        %p205 = pneg %p41
        %p206 = scmp.lt.s32.totalorder %s23, 1
        %s207 = scalar_select %p206, %s23, 1
        %s208 = smul.addr %s207, 8
        %s209 = scalar_lea.vmem %s1, %s208
        %p210 = pneg %p70
        %p211 = pneg %p67
        %p212 = pneg %p91
        %p213 = pneg %p88
        %p214 = pneg %p117
        %p215 = pneg %p114
        %s216 = sand.u32 %s104, 1
        %s217 = scalar_lea.sflag [#allocation4], %s216
        %s218 = sand.u32 %s104, 1
        %s219 = smul.addr %s218, 8
        %s220 = scalar_lea.vmem [#allocation5], %s219
        %p221 = pneg %p143
        %p222 = pneg %p140
        %s223 = sand.u32 %s130, 1
        %s224 = scalar_lea.sflag [#allocation7], %s223
        %s225 = sand.u32 %s130, 1
        %s226 = scalar_lea.vmem [#allocation6], %s225
        %p227 = scmp.lt.s32.totalorder %s23, 1
        %s228 = scalar_select %p227, %s23, 1
        %s229 = smul.addr %s228, 8
        %s230 = scalar_lea.vmem %s0, %s229
        %p231 = scmp.lt.s32.totalorder %s23, 1
        %s232 = scalar_select %p231, %s23, 1
        %s233 = smul.addr %s232, 8
        %s234 = scalar_lea.vmem %s1, %s233
        %v235 = vld [vmem:[%s230] sm:$0xff]
        %v236 = vld [vmem:[%s234] sm:$0xff]
        %v237 = vld [vmem:[#allocation2] sm:$0xff]
        %v238 = vld [vmem:[#allocation2 + $0x8] sm:$0xff]
        %v239 = vld [vmem:[#allocation2 + $0x10] sm:$0xff]
        %v240 = vld [vmem:[#allocation2 + $0x18] sm:$0xff]
        %v241 = vld [vmem:[#allocation2 + $0x20] sm:$0xff]
        %v242 = vld [vmem:[#allocation2 + $0x28] sm:$0xff]
        %v243 = vld [vmem:[#allocation2 + $0x30] sm:$0xff]
        %v244 = vld [vmem:[#allocation2 + $0x38] sm:$0xff]
        %v245 = vld [vmem:[#allocation2 + $0x40] sm:$0xff]
        %v246 = vld [vmem:[#allocation2 + $0x48] sm:$0xff]
        %v247 = vld [vmem:[#allocation2 + $0x50] sm:$0xff]
        %v248 = vld [vmem:[#allocation2 + $0x58] sm:$0xff]
        %v249 = vld [vmem:[#allocation2 + $0x60] sm:$0xff]
        %v250 = vld [vmem:[#allocation2 + $0x68] sm:$0xff]
        %v251 = vld [vmem:[#allocation2 + $0x70] sm:$0xff]
        %v252 = vld [vmem:[#allocation2 + $0x78] sm:$0xff]
        %v253 = vlaneseq
        %v254 = vand.u32 %v253, 127
        %255 = vset.pattern.permute.xlu0 0
        %256 = vperm.xlu0 %255, %v235
        %v257 = vpop.permute.xlu0 %256
        %vm258 = vcmp.eq.s32.totalorder %v254, %v257
        %v259 = vsel %vm258, 1, 0
        %v260 = vcvt.s32.f32 %v259
        %261 = vmatprep.subr.mxu0 0.0
        %v262 = vand.u32 %v237, 4294901760
        %263 = vmatpush1.msra.mxu0 %v262
        %264 = vmatprep.subr.mxu0 0.0
        %v265 = vand.u32 %v238, 4294901760
        %266 = vmatpush1.msra.mxu0 %v265
        %267 = vmatprep.subr.mxu0 0.0
        %v268 = vand.u32 %v239, 4294901760
        %269 = vmatpush1.msra.mxu0 %v268
        %270 = vmatprep.subr.mxu0 0.0
        %v271 = vand.u32 %v240, 4294901760
        %272 = vmatpush1.msra.mxu0 %v271
        %273 = vmatprep.subr.mxu0 0.0
        %v274 = vand.u32 %v241, 4294901760
        %275 = vmatpush1.msra.mxu0 %v274
        %276 = vmatprep.subr.mxu0 0.0
        %v277 = vand.u32 %v242, 4294901760
        %278 = vmatpush1.msra.mxu0 %v277
        %279 = vmatprep.subr.mxu0 0.0
        %v280 = vand.u32 %v243, 4294901760
        %281 = vmatpush1.msra.mxu0 %v280
        %282 = vmatprep.subr.mxu0 0.0
        %v283 = vand.u32 %v244, 4294901760
        %284 = vmatpush1.msra.mxu0 %v283
        %285 = vmatprep.subr.mxu0 0.0
        %v286 = vand.u32 %v245, 4294901760
        %287 = vmatpush1.msra.mxu0 %v286
        %288 = vmatprep.subr.mxu0 0.0
        %v289 = vand.u32 %v246, 4294901760
        %290 = vmatpush1.msra.mxu0 %v289
        %291 = vmatprep.subr.mxu0 0.0
        %v292 = vand.u32 %v247, 4294901760
        %293 = vmatpush1.msra.mxu0 %v292
        %294 = vmatprep.subr.mxu0 0.0
        %v295 = vand.u32 %v248, 4294901760
        %296 = vmatpush1.msra.mxu0 %v295
        %297 = vmatprep.subr.mxu0 0.0
        %v298 = vand.u32 %v249, 4294901760
        %299 = vmatpush1.msra.mxu0 %v298
        %300 = vmatprep.subr.mxu0 0.0
        %v301 = vand.u32 %v250, 4294901760
        %302 = vmatpush1.msra.mxu0 %v301
        %303 = vmatprep.subr.mxu0 0.0
        %v304 = vand.u32 %v251, 4294901760
        %305 = vmatpush1.msra.mxu0 %v304
        %306 = vmatprep.subr.mxu0 0.0
        %v307 = vand.u32 %v252, 4294901760
        %308 = vmatpush1.msra.mxu0 %v307
        %309 = vmatprep.subr.mxu0 0.0
        %310 = vmatpush1.msra.mxu0 0.0
        %311 = vmatprep.subr.mxu0 0.0
        %312 = vmatpush1.msra.mxu0 0.0
        %313 = vmatprep.subr.mxu0 0.0
        %314 = vmatpush1.msra.mxu0 0.0
        %315 = vmatprep.subr.mxu0 0.0
        %316 = vmatpush1.msra.mxu0 0.0
        %317 = vmatprep.subr.mxu0 0.0
        %318 = vmatpush1.msra.mxu0 0.0
        %319 = vmatprep.subr.mxu0 0.0
        %320 = vmatpush1.msra.mxu0 0.0
        %321 = vmatprep.subr.mxu0 0.0
        %322 = vmatpush1.msra.mxu0 0.0
        %323 = vmatprep.subr.mxu0 0.0
        %324 = vmatpush1.msra.mxu0 0.0
        %325 = vmatprep.subr.mxu0 0.0
        %326 = vmatpush1.msra.mxu0 0.0
        %327 = vmatprep.subr.mxu0 0.0
        %328 = vmatpush1.msra.mxu0 0.0
        %329 = vmatprep.subr.mxu0 0.0
        %330 = vmatpush1.msra.mxu0 0.0
        %331 = vmatprep.subr.mxu0 0.0
        %332 = vmatpush1.msra.mxu0 0.0
        %333 = vmatprep.subr.mxu0 0.0
        %334 = vmatpush1.msra.mxu0 0.0
        %335 = vmatprep.subr.mxu0 0.0
        %336 = vmatpush1.msra.mxu0 0.0
        %337 = vmatprep.subr.mxu0 0.0
        %338 = vmatpush1.msra.mxu0 0.0
        %339 = vmatprep.subr.mxu0 0.0
        %340 = vmatpush1.msra.mxu0 0.0
        %341 = vmatprep.mubr.f32.mxu0 0.0
        %v342 = vand.u32 %v260, 4294901760
        %v343 = vsub.f32 %v260, %v342
        %v344 = vand.u32 %v343, 4294901760
        %v345 = vsub.f32 %v343, %v344
        %v346 = vand.u32 %v345, 4294901760
        %347 = vmatmul.mubr.f32.gmra.mrb[0].mxu0 %v346
        %v348 = vpop.f32.mrb[0].mxu0
        %v349 = vadd.f32 0.0, %v348
        %v350 = vpop.f32.mrb[0].mxu0
        %351 = vdwg.mxu0
        %352 = vmatprep.subr.mxu0 0.0
        %v353 = vand.u32 %v237, 4294901760
        %v354 = vsub.f32 %v237, %v353
        %v355 = vand.u32 %v354, 4294901760
        %v356 = vsub.f32 %v354, %v355
        %v357 = vand.u32 %v356, 4294901760
        %358 = vmatpush1.msra.mxu0 %v357
        %359 = vmatprep.subr.mxu0 0.0
        %v360 = vand.u32 %v238, 4294901760
        %v361 = vsub.f32 %v238, %v360
        %v362 = vand.u32 %v361, 4294901760
        %v363 = vsub.f32 %v361, %v362
        %v364 = vand.u32 %v363, 4294901760
        %365 = vmatpush1.msra.mxu0 %v364
        %366 = vmatprep.subr.mxu0 0.0
        %v367 = vand.u32 %v239, 4294901760
        %v368 = vsub.f32 %v239, %v367
        %v369 = vand.u32 %v368, 4294901760
        %v370 = vsub.f32 %v368, %v369
        %v371 = vand.u32 %v370, 4294901760
        %372 = vmatpush1.msra.mxu0 %v371
        %373 = vmatprep.subr.mxu0 0.0
        %v374 = vand.u32 %v240, 4294901760
        %v375 = vsub.f32 %v240, %v374
        %v376 = vand.u32 %v375, 4294901760
        %v377 = vsub.f32 %v375, %v376
        %v378 = vand.u32 %v377, 4294901760
        %379 = vmatpush1.msra.mxu0 %v378
        %380 = vmatprep.subr.mxu0 0.0
        %v381 = vand.u32 %v241, 4294901760
        %v382 = vsub.f32 %v241, %v381
        %v383 = vand.u32 %v382, 4294901760
        %v384 = vsub.f32 %v382, %v383
        %v385 = vand.u32 %v384, 4294901760
        %386 = vmatpush1.msra.mxu0 %v385
        %387 = vmatprep.subr.mxu0 0.0
        %v388 = vand.u32 %v242, 4294901760
        %v389 = vsub.f32 %v242, %v388
        %v390 = vand.u32 %v389, 4294901760
        %v391 = vsub.f32 %v389, %v390
        %v392 = vand.u32 %v391, 4294901760
        %393 = vmatpush1.msra.mxu0 %v392
        %394 = vmatprep.subr.mxu0 0.0
        %v395 = vand.u32 %v243, 4294901760
        %v396 = vsub.f32 %v243, %v395
        %v397 = vand.u32 %v396, 4294901760
        %v398 = vsub.f32 %v396, %v397
        %v399 = vand.u32 %v398, 4294901760
        %400 = vmatpush1.msra.mxu0 %v399
        %401 = vmatprep.subr.mxu0 0.0
        %v402 = vand.u32 %v244, 4294901760
        %v403 = vsub.f32 %v244, %v402
        %v404 = vand.u32 %v403, 4294901760
        %v405 = vsub.f32 %v403, %v404
        %v406 = vand.u32 %v405, 4294901760
        %407 = vmatpush1.msra.mxu0 %v406
        %408 = vmatprep.subr.mxu0 0.0
        %v409 = vand.u32 %v245, 4294901760
        %v410 = vsub.f32 %v245, %v409
        %v411 = vand.u32 %v410, 4294901760
        %v412 = vsub.f32 %v410, %v411
        %v413 = vand.u32 %v412, 4294901760
        %414 = vmatpush1.msra.mxu0 %v413
        %415 = vmatprep.subr.mxu0 0.0
        %v416 = vand.u32 %v246, 4294901760
        %v417 = vsub.f32 %v246, %v416
        %v418 = vand.u32 %v417, 4294901760
        %v419 = vsub.f32 %v417, %v418
        %v420 = vand.u32 %v419, 4294901760
        %421 = vmatpush1.msra.mxu0 %v420
        %422 = vmatprep.subr.mxu0 0.0
        %v423 = vand.u32 %v247, 4294901760
        %v424 = vsub.f32 %v247, %v423
        %v425 = vand.u32 %v424, 4294901760
        %v426 = vsub.f32 %v424, %v425
        %v427 = vand.u32 %v426, 4294901760
        %428 = vmatpush1.msra.mxu0 %v427
        %429 = vmatprep.subr.mxu0 0.0
        %v430 = vand.u32 %v248, 4294901760
        %v431 = vsub.f32 %v248, %v430
        %v432 = vand.u32 %v431, 4294901760
        %v433 = vsub.f32 %v431, %v432
        %v434 = vand.u32 %v433, 4294901760
        %435 = vmatpush1.msra.mxu0 %v434
        %436 = vmatprep.subr.mxu0 0.0
        %v437 = vand.u32 %v249, 4294901760
        %v438 = vsub.f32 %v249, %v437
        %v439 = vand.u32 %v438, 4294901760
        %v440 = vsub.f32 %v438, %v439
        %v441 = vand.u32 %v440, 4294901760
        %442 = vmatpush1.msra.mxu0 %v441
        %443 = vmatprep.subr.mxu0 0.0
        %v444 = vand.u32 %v250, 4294901760
        %v445 = vsub.f32 %v250, %v444
        %v446 = vand.u32 %v445, 4294901760
        %v447 = vsub.f32 %v445, %v446
        %v448 = vand.u32 %v447, 4294901760
        %449 = vmatpush1.msra.mxu0 %v448
        %450 = vmatprep.subr.mxu0 0.0
        %v451 = vand.u32 %v251, 4294901760
        %v452 = vsub.f32 %v251, %v451
        %v453 = vand.u32 %v452, 4294901760
        %v454 = vsub.f32 %v452, %v453
        %v455 = vand.u32 %v454, 4294901760
        %456 = vmatpush1.msra.mxu0 %v455
        %457 = vmatprep.subr.mxu0 0.0
        %v458 = vand.u32 %v252, 4294901760
        %v459 = vsub.f32 %v252, %v458
        %v460 = vand.u32 %v459, 4294901760
        %v461 = vsub.f32 %v459, %v460
        %v462 = vand.u32 %v461, 4294901760
        %463 = vmatpush1.msra.mxu0 %v462
        %464 = vmatprep.subr.mxu0 0.0
        %465 = vmatpush1.msra.mxu0 0.0
        %466 = vmatprep.subr.mxu0 0.0
        %467 = vmatpush1.msra.mxu0 0.0
        %468 = vmatprep.subr.mxu0 0.0
        %469 = vmatpush1.msra.mxu0 0.0
        %470 = vmatprep.subr.mxu0 0.0
        %471 = vmatpush1.msra.mxu0 0.0
        %472 = vmatprep.subr.mxu0 0.0
        %473 = vmatpush1.msra.mxu0 0.0
        %474 = vmatprep.subr.mxu0 0.0
        %475 = vmatpush1.msra.mxu0 0.0
        %476 = vmatprep.subr.mxu0 0.0
        %477 = vmatpush1.msra.mxu0 0.0
        %478 = vmatprep.subr.mxu0 0.0
        %479 = vmatpush1.msra.mxu0 0.0
        %480 = vmatprep.subr.mxu0 0.0
        %481 = vmatpush1.msra.mxu0 0.0
        %482 = vmatprep.subr.mxu0 0.0
        %483 = vmatpush1.msra.mxu0 0.0
        %484 = vmatprep.subr.mxu0 0.0
        %485 = vmatpush1.msra.mxu0 0.0
        %486 = vmatprep.subr.mxu0 0.0
        %487 = vmatpush1.msra.mxu0 0.0
        %488 = vmatprep.subr.mxu0 0.0
        %489 = vmatpush1.msra.mxu0 0.0
        %490 = vmatprep.subr.mxu0 0.0
        %491 = vmatpush1.msra.mxu0 0.0
        %492 = vmatprep.subr.mxu0 0.0
        %493 = vmatpush1.msra.mxu0 0.0
        %494 = vmatprep.subr.mxu0 0.0
        %495 = vmatpush1.msra.mxu0 0.0
        %496 = vmatprep.mubr.f32.mxu0 0.0
        %v497 = vand.u32 %v260, 4294901760
        %498 = vmatmul.mubr.f32.gmra.mrb[0].mxu0 %v497
        %v499 = vpop.f32.mrb[0].mxu0
        %v500 = vadd.f32 %v349, %v499
        %v501 = vpop.f32.mrb[0].mxu0
        %502 = vdwg.mxu0
        %503 = vmatprep.subr.mxu0 0.0
        %v504 = vand.u32 %v237, 4294901760
        %v505 = vsub.f32 %v237, %v504
        %506 = vmatpush1.msra.mxu0 %v505
        %507 = vmatprep.subr.mxu0 0.0
        %v508 = vand.u32 %v238, 4294901760
        %v509 = vsub.f32 %v238, %v508
        %510 = vmatpush1.msra.mxu0 %v509
        %511 = vmatprep.subr.mxu0 0.0
        %v512 = vand.u32 %v239, 4294901760
        %v513 = vsub.f32 %v239, %v512
        %514 = vmatpush1.msra.mxu0 %v513
        %515 = vmatprep.subr.mxu0 0.0
        %v516 = vand.u32 %v240, 4294901760
        %v517 = vsub.f32 %v240, %v516
        %518 = vmatpush1.msra.mxu0 %v517
        %519 = vmatprep.subr.mxu0 0.0
        %v520 = vand.u32 %v241, 4294901760
        %v521 = vsub.f32 %v241, %v520
        %522 = vmatpush1.msra.mxu0 %v521
        %523 = vmatprep.subr.mxu0 0.0
        %v524 = vand.u32 %v242, 4294901760
        %v525 = vsub.f32 %v242, %v524
        %526 = vmatpush1.msra.mxu0 %v525
        %527 = vmatprep.subr.mxu0 0.0
        %v528 = vand.u32 %v243, 4294901760
        %v529 = vsub.f32 %v243, %v528
        %530 = vmatpush1.msra.mxu0 %v529
        %531 = vmatprep.subr.mxu0 0.0
        %v532 = vand.u32 %v244, 4294901760
        %v533 = vsub.f32 %v244, %v532
        %534 = vmatpush1.msra.mxu0 %v533
        %535 = vmatprep.subr.mxu0 0.0
        %v536 = vand.u32 %v245, 4294901760
        %v537 = vsub.f32 %v245, %v536
        %538 = vmatpush1.msra.mxu0 %v537
        %539 = vmatprep.subr.mxu0 0.0
        %v540 = vand.u32 %v246, 4294901760
        %v541 = vsub.f32 %v246, %v540
        %542 = vmatpush1.msra.mxu0 %v541
        %543 = vmatprep.subr.mxu0 0.0
        %v544 = vand.u32 %v247, 4294901760
        %v545 = vsub.f32 %v247, %v544
        %546 = vmatpush1.msra.mxu0 %v545
        %547 = vmatprep.subr.mxu0 0.0
        %v548 = vand.u32 %v248, 4294901760
        %v549 = vsub.f32 %v248, %v548
        %550 = vmatpush1.msra.mxu0 %v549
        %551 = vmatprep.subr.mxu0 0.0
        %v552 = vand.u32 %v249, 4294901760
        %v553 = vsub.f32 %v249, %v552
        %554 = vmatpush1.msra.mxu0 %v553
        %555 = vmatprep.subr.mxu0 0.0
        %v556 = vand.u32 %v250, 4294901760
        %v557 = vsub.f32 %v250, %v556
        %558 = vmatpush1.msra.mxu0 %v557
        %559 = vmatprep.subr.mxu0 0.0
        %v560 = vand.u32 %v251, 4294901760
        %v561 = vsub.f32 %v251, %v560
        %562 = vmatpush1.msra.mxu0 %v561
        %563 = vmatprep.subr.mxu0 0.0
        %v564 = vand.u32 %v252, 4294901760
        %v565 = vsub.f32 %v252, %v564
        %566 = vmatpush1.msra.mxu0 %v565
        %567 = vmatprep.subr.mxu0 0.0
        %568 = vmatpush1.msra.mxu0 0.0
        %569 = vmatprep.subr.mxu0 0.0
        %570 = vmatpush1.msra.mxu0 0.0
        %571 = vmatprep.subr.mxu0 0.0
        %572 = vmatpush1.msra.mxu0 0.0
        %573 = vmatprep.subr.mxu0 0.0
        %574 = vmatpush1.msra.mxu0 0.0
        %575 = vmatprep.subr.mxu0 0.0
        %576 = vmatpush1.msra.mxu0 0.0
        %577 = vmatprep.subr.mxu0 0.0
        %578 = vmatpush1.msra.mxu0 0.0
        %579 = vmatprep.subr.mxu0 0.0
        %580 = vmatpush1.msra.mxu0 0.0
        %581 = vmatprep.subr.mxu0 0.0
        %582 = vmatpush1.msra.mxu0 0.0
        %583 = vmatprep.subr.mxu0 0.0
        %584 = vmatpush1.msra.mxu0 0.0
        %585 = vmatprep.subr.mxu0 0.0
        %586 = vmatpush1.msra.mxu0 0.0
        %587 = vmatprep.subr.mxu0 0.0
        %588 = vmatpush1.msra.mxu0 0.0
        %589 = vmatprep.subr.mxu0 0.0
        %590 = vmatpush1.msra.mxu0 0.0
        %591 = vmatprep.subr.mxu0 0.0
        %592 = vmatpush1.msra.mxu0 0.0
        %593 = vmatprep.subr.mxu0 0.0
        %594 = vmatpush1.msra.mxu0 0.0
        %595 = vmatprep.subr.mxu0 0.0
        %596 = vmatpush1.msra.mxu0 0.0
        %597 = vmatprep.subr.mxu0 0.0
        %598 = vmatpush1.msra.mxu0 0.0
        %599 = vmatprep.mubr.f32.mxu0 0.0
        %v600 = vand.u32 %v260, 4294901760
        %v601 = vsub.f32 %v260, %v600
        %602 = vmatmul.mubr.f32.gmra.mrb[0].mxu0 %v601
        %v603 = vpop.f32.mrb[0].mxu0
        %v604 = vadd.f32 %v500, %v603
        %v605 = vpop.f32.mrb[0].mxu0
        %606 = vdwg.mxu0
        %607 = vmatprep.subr.mxu0 0.0
        %v608 = vand.u32 %v237, 4294901760
        %609 = vmatpush1.msra.mxu0 %v608
        %610 = vmatprep.subr.mxu0 0.0
        %v611 = vand.u32 %v238, 4294901760
        %612 = vmatpush1.msra.mxu0 %v611
        %613 = vmatprep.subr.mxu0 0.0
        %v614 = vand.u32 %v239, 4294901760
        %615 = vmatpush1.msra.mxu0 %v614
        %616 = vmatprep.subr.mxu0 0.0
        %v617 = vand.u32 %v240, 4294901760
        %618 = vmatpush1.msra.mxu0 %v617
        %619 = vmatprep.subr.mxu0 0.0
        %v620 = vand.u32 %v241, 4294901760
        %621 = vmatpush1.msra.mxu0 %v620
        %622 = vmatprep.subr.mxu0 0.0
        %v623 = vand.u32 %v242, 4294901760
        %624 = vmatpush1.msra.mxu0 %v623
        %625 = vmatprep.subr.mxu0 0.0
        %v626 = vand.u32 %v243, 4294901760
        %627 = vmatpush1.msra.mxu0 %v626
        %628 = vmatprep.subr.mxu0 0.0
        %v629 = vand.u32 %v244, 4294901760
        %630 = vmatpush1.msra.mxu0 %v629
        %631 = vmatprep.subr.mxu0 0.0
        %v632 = vand.u32 %v245, 4294901760
        %633 = vmatpush1.msra.mxu0 %v632
        %634 = vmatprep.subr.mxu0 0.0
        %v635 = vand.u32 %v246, 4294901760
        %636 = vmatpush1.msra.mxu0 %v635
        %637 = vmatprep.subr.mxu0 0.0
        %v638 = vand.u32 %v247, 4294901760
        %639 = vmatpush1.msra.mxu0 %v638
        %640 = vmatprep.subr.mxu0 0.0
        %v641 = vand.u32 %v248, 4294901760
        %642 = vmatpush1.msra.mxu0 %v641
        %643 = vmatprep.subr.mxu0 0.0
        %v644 = vand.u32 %v249, 4294901760
        %645 = vmatpush1.msra.mxu0 %v644
        %646 = vmatprep.subr.mxu0 0.0
        %v647 = vand.u32 %v250, 4294901760
        %648 = vmatpush1.msra.mxu0 %v647
        %649 = vmatprep.subr.mxu0 0.0
        %v650 = vand.u32 %v251, 4294901760
        %651 = vmatpush1.msra.mxu0 %v650
        %652 = vmatprep.subr.mxu0 0.0
        %v653 = vand.u32 %v252, 4294901760
        %654 = vmatpush1.msra.mxu0 %v653
        %655 = vmatprep.subr.mxu0 0.0
        %656 = vmatpush1.msra.mxu0 0.0
        %657 = vmatprep.subr.mxu0 0.0
        %658 = vmatpush1.msra.mxu0 0.0
        %659 = vmatprep.subr.mxu0 0.0
        %660 = vmatpush1.msra.mxu0 0.0
        %661 = vmatprep.subr.mxu0 0.0
        %662 = vmatpush1.msra.mxu0 0.0
        %663 = vmatprep.subr.mxu0 0.0
        %664 = vmatpush1.msra.mxu0 0.0
        %665 = vmatprep.subr.mxu0 0.0
        %666 = vmatpush1.msra.mxu0 0.0
        %667 = vmatprep.subr.mxu0 0.0
        %668 = vmatpush1.msra.mxu0 0.0
        %669 = vmatprep.subr.mxu0 0.0
        %670 = vmatpush1.msra.mxu0 0.0
        %671 = vmatprep.subr.mxu0 0.0
        %672 = vmatpush1.msra.mxu0 0.0
        %673 = vmatprep.subr.mxu0 0.0
        %674 = vmatpush1.msra.mxu0 0.0
        %675 = vmatprep.subr.mxu0 0.0
        %676 = vmatpush1.msra.mxu0 0.0
        %677 = vmatprep.subr.mxu0 0.0
        %678 = vmatpush1.msra.mxu0 0.0
        %679 = vmatprep.subr.mxu0 0.0
        %680 = vmatpush1.msra.mxu0 0.0
        %681 = vmatprep.subr.mxu0 0.0
        %682 = vmatpush1.msra.mxu0 0.0
        %683 = vmatprep.subr.mxu0 0.0
        %684 = vmatpush1.msra.mxu0 0.0
        %685 = vmatprep.subr.mxu0 0.0
        %686 = vmatpush1.msra.mxu0 0.0
        %687 = vmatprep.mubr.f32.mxu0 0.0
        %v688 = vand.u32 %v260, 4294901760
        %v689 = vsub.f32 %v260, %v688
        %v690 = vand.u32 %v689, 4294901760
        %691 = vmatmul.mubr.f32.gmra.mrb[0].mxu0 %v690
        %v692 = vpop.f32.mrb[0].mxu0
        %v693 = vadd.f32 %v604, %v692
        %v694 = vpop.f32.mrb[0].mxu0
        %695 = vdwg.mxu0
        %696 = vmatprep.subr.mxu0 0.0
        %v697 = vand.u32 %v237, 4294901760
        %v698 = vsub.f32 %v237, %v697
        %v699 = vand.u32 %v698, 4294901760
        %700 = vmatpush1.msra.mxu0 %v699
        %701 = vmatprep.subr.mxu0 0.0
        %v702 = vand.u32 %v238, 4294901760
        %v703 = vsub.f32 %v238, %v702
        %v704 = vand.u32 %v703, 4294901760
        %705 = vmatpush1.msra.mxu0 %v704
        %706 = vmatprep.subr.mxu0 0.0
        %v707 = vand.u32 %v239, 4294901760
        %v708 = vsub.f32 %v239, %v707
        %v709 = vand.u32 %v708, 4294901760
        %710 = vmatpush1.msra.mxu0 %v709
        %711 = vmatprep.subr.mxu0 0.0
        %v712 = vand.u32 %v240, 4294901760
        %v713 = vsub.f32 %v240, %v712
        %v714 = vand.u32 %v713, 4294901760
        %715 = vmatpush1.msra.mxu0 %v714
        %716 = vmatprep.subr.mxu0 0.0
        %v717 = vand.u32 %v241, 4294901760
        %v718 = vsub.f32 %v241, %v717
        %v719 = vand.u32 %v718, 4294901760
        %720 = vmatpush1.msra.mxu0 %v719
        %721 = vmatprep.subr.mxu0 0.0
        %v722 = vand.u32 %v242, 4294901760
        %v723 = vsub.f32 %v242, %v722
        %v724 = vand.u32 %v723, 4294901760
        %725 = vmatpush1.msra.mxu0 %v724
        %726 = vmatprep.subr.mxu0 0.0
        %v727 = vand.u32 %v243, 4294901760
        %v728 = vsub.f32 %v243, %v727
        %v729 = vand.u32 %v728, 4294901760
        %730 = vmatpush1.msra.mxu0 %v729
        %731 = vmatprep.subr.mxu0 0.0
        %v732 = vand.u32 %v244, 4294901760
        %v733 = vsub.f32 %v244, %v732
        %v734 = vand.u32 %v733, 4294901760
        %735 = vmatpush1.msra.mxu0 %v734
        %736 = vmatprep.subr.mxu0 0.0
        %v737 = vand.u32 %v245, 4294901760
        %v738 = vsub.f32 %v245, %v737
        %v739 = vand.u32 %v738, 4294901760
        %740 = vmatpush1.msra.mxu0 %v739
        %741 = vmatprep.subr.mxu0 0.0
        %v742 = vand.u32 %v246, 4294901760
        %v743 = vsub.f32 %v246, %v742
        %v744 = vand.u32 %v743, 4294901760
        %745 = vmatpush1.msra.mxu0 %v744
        %746 = vmatprep.subr.mxu0 0.0
        %v747 = vand.u32 %v247, 4294901760
        %v748 = vsub.f32 %v247, %v747
        %v749 = vand.u32 %v748, 4294901760
        %750 = vmatpush1.msra.mxu0 %v749
        %751 = vmatprep.subr.mxu0 0.0
        %v752 = vand.u32 %v248, 4294901760
        %v753 = vsub.f32 %v248, %v752
        %v754 = vand.u32 %v753, 4294901760
        %755 = vmatpush1.msra.mxu0 %v754
        %756 = vmatprep.subr.mxu0 0.0
        %v757 = vand.u32 %v249, 4294901760
        %v758 = vsub.f32 %v249, %v757
        %v759 = vand.u32 %v758, 4294901760
        %760 = vmatpush1.msra.mxu0 %v759
        %761 = vmatprep.subr.mxu0 0.0
        %v762 = vand.u32 %v250, 4294901760
        %v763 = vsub.f32 %v250, %v762
        %v764 = vand.u32 %v763, 4294901760
        %765 = vmatpush1.msra.mxu0 %v764
        %766 = vmatprep.subr.mxu0 0.0
        %v767 = vand.u32 %v251, 4294901760
        %v768 = vsub.f32 %v251, %v767
        %v769 = vand.u32 %v768, 4294901760
        %770 = vmatpush1.msra.mxu0 %v769
        %771 = vmatprep.subr.mxu0 0.0
        %v772 = vand.u32 %v252, 4294901760
        %v773 = vsub.f32 %v252, %v772
        %v774 = vand.u32 %v773, 4294901760
        %775 = vmatpush1.msra.mxu0 %v774
        %776 = vmatprep.subr.mxu0 0.0
        %777 = vmatpush1.msra.mxu0 0.0
        %778 = vmatprep.subr.mxu0 0.0
        %779 = vmatpush1.msra.mxu0 0.0
        %780 = vmatprep.subr.mxu0 0.0
        %781 = vmatpush1.msra.mxu0 0.0
        %782 = vmatprep.subr.mxu0 0.0
        %783 = vmatpush1.msra.mxu0 0.0
        %784 = vmatprep.subr.mxu0 0.0
        %785 = vmatpush1.msra.mxu0 0.0
        %786 = vmatprep.subr.mxu0 0.0
        %787 = vmatpush1.msra.mxu0 0.0
        %788 = vmatprep.subr.mxu0 0.0
        %789 = vmatpush1.msra.mxu0 0.0
        %790 = vmatprep.subr.mxu0 0.0
        %791 = vmatpush1.msra.mxu0 0.0
        %792 = vmatprep.subr.mxu0 0.0
        %793 = vmatpush1.msra.mxu0 0.0
        %794 = vmatprep.subr.mxu0 0.0
        %795 = vmatpush1.msra.mxu0 0.0
        %796 = vmatprep.subr.mxu0 0.0
        %797 = vmatpush1.msra.mxu0 0.0
        %798 = vmatprep.subr.mxu0 0.0
        %799 = vmatpush1.msra.mxu0 0.0
        %800 = vmatprep.subr.mxu0 0.0
        %801 = vmatpush1.msra.mxu0 0.0
        %802 = vmatprep.subr.mxu0 0.0
        %803 = vmatpush1.msra.mxu0 0.0
        %804 = vmatprep.subr.mxu0 0.0
        %805 = vmatpush1.msra.mxu0 0.0
        %806 = vmatprep.subr.mxu0 0.0
        %807 = vmatpush1.msra.mxu0 0.0
        %808 = vmatprep.mubr.f32.mxu0 0.0
        %v809 = vand.u32 %v260, 4294901760
        %810 = vmatmul.mubr.f32.gmra.mrb[0].mxu0 %v809
        %v811 = vpop.f32.mrb[0].mxu0
        %v812 = vadd.f32 %v693, %v811
        %v813 = vpop.f32.mrb[0].mxu0
        %814 = vdwg.mxu0
        %815 = vmatprep.subr.mxu0 0.0
        %v816 = vand.u32 %v237, 4294901760
        %817 = vmatpush1.msra.mxu0 %v816
        %818 = vmatprep.subr.mxu0 0.0
        %v819 = vand.u32 %v238, 4294901760
        %820 = vmatpush1.msra.mxu0 %v819
        %821 = vmatprep.subr.mxu0 0.0
        %v822 = vand.u32 %v239, 4294901760
        %823 = vmatpush1.msra.mxu0 %v822
        %824 = vmatprep.subr.mxu0 0.0
        %v825 = vand.u32 %v240, 4294901760
        %826 = vmatpush1.msra.mxu0 %v825
        %827 = vmatprep.subr.mxu0 0.0
        %v828 = vand.u32 %v241, 4294901760
        %829 = vmatpush1.msra.mxu0 %v828
        %830 = vmatprep.subr.mxu0 0.0
        %v831 = vand.u32 %v242, 4294901760
        %832 = vmatpush1.msra.mxu0 %v831
        %833 = vmatprep.subr.mxu0 0.0
        %v834 = vand.u32 %v243, 4294901760
        %835 = vmatpush1.msra.mxu0 %v834
        %836 = vmatprep.subr.mxu0 0.0
        %v837 = vand.u32 %v244, 4294901760
        %838 = vmatpush1.msra.mxu0 %v837
        %839 = vmatprep.subr.mxu0 0.0
        %v840 = vand.u32 %v245, 4294901760
        %841 = vmatpush1.msra.mxu0 %v840
        %842 = vmatprep.subr.mxu0 0.0
        %v843 = vand.u32 %v246, 4294901760
        %844 = vmatpush1.msra.mxu0 %v843
        %845 = vmatprep.subr.mxu0 0.0
        %v846 = vand.u32 %v247, 4294901760
        %847 = vmatpush1.msra.mxu0 %v846
        %848 = vmatprep.subr.mxu0 0.0
        %v849 = vand.u32 %v248, 4294901760
        %850 = vmatpush1.msra.mxu0 %v849
        %851 = vmatprep.subr.mxu0 0.0
        %v852 = vand.u32 %v249, 4294901760
        %853 = vmatpush1.msra.mxu0 %v852
        %854 = vmatprep.subr.mxu0 0.0
        %v855 = vand.u32 %v250, 4294901760
        %856 = vmatpush1.msra.mxu0 %v855
        %857 = vmatprep.subr.mxu0 0.0
        %v858 = vand.u32 %v251, 4294901760
        %859 = vmatpush1.msra.mxu0 %v858
        %860 = vmatprep.subr.mxu0 0.0
        %v861 = vand.u32 %v252, 4294901760
        %862 = vmatpush1.msra.mxu0 %v861
        %863 = vmatprep.subr.mxu0 0.0
        %864 = vmatpush1.msra.mxu0 0.0
        %865 = vmatprep.subr.mxu0 0.0
        %866 = vmatpush1.msra.mxu0 0.0
        %867 = vmatprep.subr.mxu0 0.0
        %868 = vmatpush1.msra.mxu0 0.0
        %869 = vmatprep.subr.mxu0 0.0
        %870 = vmatpush1.msra.mxu0 0.0
        %871 = vmatprep.subr.mxu0 0.0
        %872 = vmatpush1.msra.mxu0 0.0
        %873 = vmatprep.subr.mxu0 0.0
        %874 = vmatpush1.msra.mxu0 0.0
        %875 = vmatprep.subr.mxu0 0.0
        %876 = vmatpush1.msra.mxu0 0.0
        %877 = vmatprep.subr.mxu0 0.0
        %878 = vmatpush1.msra.mxu0 0.0
        %879 = vmatprep.subr.mxu0 0.0
        %880 = vmatpush1.msra.mxu0 0.0
        %881 = vmatprep.subr.mxu0 0.0
        %882 = vmatpush1.msra.mxu0 0.0
        %883 = vmatprep.subr.mxu0 0.0
        %884 = vmatpush1.msra.mxu0 0.0
        %885 = vmatprep.subr.mxu0 0.0
        %886 = vmatpush1.msra.mxu0 0.0
        %887 = vmatprep.subr.mxu0 0.0
        %888 = vmatpush1.msra.mxu0 0.0
        %889 = vmatprep.subr.mxu0 0.0
        %890 = vmatpush1.msra.mxu0 0.0
        %891 = vmatprep.subr.mxu0 0.0
        %892 = vmatpush1.msra.mxu0 0.0
        %893 = vmatprep.subr.mxu0 0.0
        %894 = vmatpush1.msra.mxu0 0.0
        %895 = vmatprep.mubr.f32.mxu0 0.0
        %v896 = vand.u32 %v260, 4294901760
        %897 = vmatmul.mubr.f32.gmra.mrb[0].mxu0 %v896
        %v898 = vpop.f32.mrb[0].mxu0
        %v899 = vadd.f32 %v812, %v898
        %v900 = vpop.f32.mrb[0].mxu0
        %901 = vdwg.mxu0
        %vm902 = vcmask 130048
        %903 = vst.msk [vmem:[%s220] sm:$0xff] %vm902, %v899
        %v904 = vlaneseq
        %v905 = vshrl.u32 %v904, 7
        %s906 = smul.u32 %s23, 8
        %v907 = vstv %s906
        %v908 = vadd.s32 %v905, %v907
        %vm909 = vcmp.lt.s32.totalorder %v908, 16
        %v910 = vsel %vm909, 1, 0
        %v911 = vcvt.s32.f32 %v910
        %vm912 = vcmp.eq.s32.totalorder %v254, 127
        %v913 = vsel %vm912, 1.0, 0.0
        %914 = vset.pattern.permute.xlu0 0
        %915 = vperm.xlu0 %914, %v236
        %v916 = vpop.permute.xlu0 %915
        %vm917 = vcmp.eq.s32.totalorder %v254, %v916
        %v918 = vsel %vm917, 1.0, 0.0
        %v919 = vsub.f32 %v913, %v918
        %v920 = vmul.f32 %v919, %v911
        %921 = vxpose.xlu0.b32.start [1/16] %v260, 128
        %922 = vxpose.xlu0.b32.cont [2/16] 0.0, 128
        %923 = vxpose.xlu0.b32.cont [3/16] 0.0, 128
        %924 = vxpose.xlu0.b32.cont [4/16] 0.0, 128
        %925 = vxpose.xlu0.b32.cont [5/16] 0.0, 128
        %926 = vxpose.xlu0.b32.cont [6/16] 0.0, 128
        %927 = vxpose.xlu0.b32.cont [7/16] 0.0, 128
        %928 = vxpose.xlu0.b32.cont [8/16] 0.0, 128
        %929 = vxpose.xlu0.b32.cont [9/16] 0.0, 128
        %930 = vxpose.xlu0.b32.cont [10/16] 0.0, 128
        %931 = vxpose.xlu0.b32.cont [11/16] 0.0, 128
        %932 = vxpose.xlu0.b32.cont [12/16] 0.0, 128
        %933 = vxpose.xlu0.b32.cont [13/16] 0.0, 128
        %934 = vxpose.xlu0.b32.cont [14/16] 0.0, 128
        %935 = vxpose.xlu0.b32.cont [15/16] 0.0, 128
        %936 = vxpose.xlu0.b32.end [16/16] 0.0, 128
        %v937 = vpop.trf.xlu0
        %v938 = vpop.trf.xlu0
        %v939 = vpop.trf.xlu0
        %v940 = vpop.trf.xlu0
        %v941 = vpop.trf.xlu0
        %v942 = vpop.trf.xlu0
        %v943 = vpop.trf.xlu0
        %v944 = vpop.trf.xlu0
        %v945 = vpop.trf.xlu0
        %v946 = vpop.trf.xlu0
        %v947 = vpop.trf.xlu0
        %v948 = vpop.trf.xlu0
        %v949 = vpop.trf.xlu0
        %v950 = vpop.trf.xlu0
        %v951 = vpop.trf.xlu0
        %v952 = vpop.trf.xlu0
        %vm953 = vcmask 64512
        %v955 = vsel %vm953, %v937, 0
        %v958 = vsel %vm953, %v938, 0
        %v961 = vsel %vm953, %v939, 0
        %v964 = vsel %vm953, %v940, 0
        %v967 = vsel %vm953, %v941, 0
        %v970 = vsel %vm953, %v942, 0
        %v973 = vsel %vm953, %v943, 0
        %v976 = vsel %vm953, %v944, 0
        %v979 = vsel %vm953, %v945, 0
        %v982 = vsel %vm953, %v946, 0
        %v985 = vsel %vm953, %v947, 0
        %v988 = vsel %vm953, %v948, 0
        %v991 = vsel %vm953, %v949, 0
        %v994 = vsel %vm953, %v950, 0
        %v997 = vsel %vm953, %v951, 0
        %v1000 = vsel %vm953, %v952, 0
        %1002 = vmatprep.subr.mxu0 0.0
        %1003 = vmatpush1.msra.mxu0 %v920
        %1004 = vmatprep.subr.mxu0 0.0
        %1005 = vmatpush1.msra.mxu0 0.0
        %1006 = vmatprep.subr.mxu0 0.0
        %1007 = vmatpush1.msra.mxu0 0.0
        %1008 = vmatprep.subr.mxu0 0.0
        %1009 = vmatpush1.msra.mxu0 0.0
        %1010 = vmatprep.subr.mxu0 0.0
        %1011 = vmatpush1.msra.mxu0 0.0
        %1012 = vmatprep.subr.mxu0 0.0
        %1013 = vmatpush1.msra.mxu0 0.0
        %1014 = vmatprep.subr.mxu0 0.0
        %1015 = vmatpush1.msra.mxu0 0.0
        %1016 = vmatprep.subr.mxu0 0.0
        %1017 = vmatpush1.msra.mxu0 0.0
        %1018 = vmatprep.subr.mxu0 0.0
        %1019 = vmatpush1.msra.mxu0 0.0
        %1020 = vmatprep.subr.mxu0 0.0
        %1021 = vmatpush1.msra.mxu0 0.0
        %1022 = vmatprep.subr.mxu0 0.0
        %1023 = vmatpush1.msra.mxu0 0.0
        %1024 = vmatprep.subr.mxu0 0.0
        %1025 = vmatpush1.msra.mxu0 0.0
        %1026 = vmatprep.subr.mxu0 0.0
        %1027 = vmatpush1.msra.mxu0 0.0
        %1028 = vmatprep.subr.mxu0 0.0
        %1029 = vmatpush1.msra.mxu0 0.0
        %1030 = vmatprep.subr.mxu0 0.0
        %1031 = vmatpush1.msra.mxu0 0.0
        %1032 = vmatprep.subr.mxu0 0.0
        %1033 = vmatpush1.msra.mxu0 0.0
        %1034 = vmatprep.subr.mxu0 0.0
        %1035 = vmatpush1.msra.mxu0 0.0
        %1036 = vmatprep.subr.mxu0 0.0
        %1037 = vmatpush1.msra.mxu0 0.0
        %1038 = vmatprep.subr.mxu0 0.0
        %1039 = vmatpush1.msra.mxu0 0.0
        %1040 = vmatprep.subr.mxu0 0.0
        %1041 = vmatpush1.msra.mxu0 0.0
        %1042 = vmatprep.subr.mxu0 0.0
        %1043 = vmatpush1.msra.mxu0 0.0
        %1044 = vmatprep.subr.mxu0 0.0
        %1045 = vmatpush1.msra.mxu0 0.0
        %1046 = vmatprep.subr.mxu0 0.0
        %1047 = vmatpush1.msra.mxu0 0.0
        %1048 = vmatprep.subr.mxu0 0.0
        %1049 = vmatpush1.msra.mxu0 0.0
        %1050 = vmatprep.subr.mxu0 0.0
        %1051 = vmatpush1.msra.mxu0 0.0
        %1052 = vmatprep.subr.mxu0 0.0
        %1053 = vmatpush1.msra.mxu0 0.0
        %1054 = vmatprep.subr.mxu0 0.0
        %1055 = vmatpush1.msra.mxu0 0.0
        %1056 = vmatprep.subr.mxu0 0.0
        %1057 = vmatpush1.msra.mxu0 0.0
        %1058 = vmatprep.subr.mxu0 0.0
        %1059 = vmatpush1.msra.mxu0 0.0
        %1060 = vmatprep.subr.mxu0 0.0
        %1061 = vmatpush1.msra.mxu0 0.0
        %1062 = vmatprep.subr.mxu0 0.0
        %1063 = vmatpush1.msra.mxu0 0.0
        %1064 = vmatprep.subr.mxu0 0.0
        %1065 = vmatpush1.msra.mxu0 0.0
        %1066 = vmatprep.mubr.f32.mxu0 0.0
        %1067 = vmatmul.mubr.f32.gmra.mrb[0].mxu0 %v955
        %v1068 = vpop.f32.mrb[0].mxu0
        %v1069 = vadd.f32 0.0, %v1068
        %v1070 = vpop.f32.mrb[0].mxu0
        %1071 = vmatprep.mubr.f32.mxu0 0.0
        %1072 = vmatmul.mubr.f32.gmra.mrb[0].mxu0 %v958
        %v1073 = vpop.f32.mrb[0].mxu0
        %v1074 = vadd.f32 0.0, %v1073
        %v1075 = vpop.f32.mrb[0].mxu0
        %1076 = vmatprep.mubr.f32.mxu0 0.0
        %1077 = vmatmul.mubr.f32.gmra.mrb[0].mxu0 %v961
        %v1078 = vpop.f32.mrb[0].mxu0
        %v1079 = vadd.f32 0.0, %v1078
        %v1080 = vpop.f32.mrb[0].mxu0
        %1081 = vmatprep.mubr.f32.mxu0 0.0
        %1082 = vmatmul.mubr.f32.gmra.mrb[0].mxu0 %v964
        %v1083 = vpop.f32.mrb[0].mxu0
        %v1084 = vadd.f32 0.0, %v1083
        %v1085 = vpop.f32.mrb[0].mxu0
        %1086 = vmatprep.mubr.f32.mxu0 0.0
        %1087 = vmatmul.mubr.f32.gmra.mrb[0].mxu0 %v967
        %v1088 = vpop.f32.mrb[0].mxu0
        %v1089 = vadd.f32 0.0, %v1088
        %v1090 = vpop.f32.mrb[0].mxu0
        %1091 = vmatprep.mubr.f32.mxu0 0.0
        %1092 = vmatmul.mubr.f32.gmra.mrb[0].mxu0 %v970
        %v1093 = vpop.f32.mrb[0].mxu0
        %v1094 = vadd.f32 0.0, %v1093
        %v1095 = vpop.f32.mrb[0].mxu0
        %1096 = vmatprep.mubr.f32.mxu0 0.0
        %1097 = vmatmul.mubr.f32.gmra.mrb[0].mxu0 %v973
        %v1098 = vpop.f32.mrb[0].mxu0
        %v1099 = vadd.f32 0.0, %v1098
        %v1100 = vpop.f32.mrb[0].mxu0
        %1101 = vmatprep.mubr.f32.mxu0 0.0
        %1102 = vmatmul.mubr.f32.gmra.mrb[0].mxu0 %v976
        %v1103 = vpop.f32.mrb[0].mxu0
        %v1104 = vadd.f32 0.0, %v1103
        %v1105 = vpop.f32.mrb[0].mxu0
        %1106 = vmatprep.mubr.f32.mxu0 0.0
        %1107 = vmatmul.mubr.f32.gmra.mrb[0].mxu0 %v979
        %v1108 = vpop.f32.mrb[0].mxu0
        %v1109 = vadd.f32 0.0, %v1108
        %v1110 = vpop.f32.mrb[0].mxu0
        %1111 = vmatprep.mubr.f32.mxu0 0.0
        %1112 = vmatmul.mubr.f32.gmra.mrb[0].mxu0 %v982
        %v1113 = vpop.f32.mrb[0].mxu0
        %v1114 = vadd.f32 0.0, %v1113
        %v1115 = vpop.f32.mrb[0].mxu0
        %1116 = vmatprep.mubr.f32.mxu0 0.0
        %1117 = vmatmul.mubr.f32.gmra.mrb[0].mxu0 %v985
        %v1118 = vpop.f32.mrb[0].mxu0
        %v1119 = vadd.f32 0.0, %v1118
        %v1120 = vpop.f32.mrb[0].mxu0
        %1121 = vmatprep.mubr.f32.mxu0 0.0
        %1122 = vmatmul.mubr.f32.gmra.mrb[0].mxu0 %v988
        %v1123 = vpop.f32.mrb[0].mxu0
        %v1124 = vadd.f32 0.0, %v1123
        %v1125 = vpop.f32.mrb[0].mxu0
        %1126 = vmatprep.mubr.f32.mxu0 0.0
        %1127 = vmatmul.mubr.f32.gmra.mrb[0].mxu0 %v991
        %v1128 = vpop.f32.mrb[0].mxu0
        %v1129 = vadd.f32 0.0, %v1128
        %v1130 = vpop.f32.mrb[0].mxu0
        %1131 = vmatprep.mubr.f32.mxu0 0.0
        %1132 = vmatmul.mubr.f32.gmra.mrb[0].mxu0 %v994
        %v1133 = vpop.f32.mrb[0].mxu0
        %v1134 = vadd.f32 0.0, %v1133
        %v1135 = vpop.f32.mrb[0].mxu0
        %1136 = vmatprep.mubr.f32.mxu0 0.0
        %1137 = vmatmul.mubr.f32.gmra.mrb[0].mxu0 %v997
        %v1138 = vpop.f32.mrb[0].mxu0
        %v1139 = vadd.f32 0.0, %v1138
        %v1140 = vpop.f32.mrb[0].mxu0
        %1141 = vmatprep.mubr.f32.mxu0 0.0
        %1142 = vmatmul.mubr.f32.gmra.mrb[0].mxu0 %v1000
        %v1143 = vpop.f32.mrb[0].mxu0
        %v1144 = vadd.f32 0.0, %v1143
        %v1145 = vpop.f32.mrb[0].mxu0
        %1146 = vdwg.mxu0
        %v1147 = vmul.f32 %v1069, %v237
        %v1148 = vmul.f32 %v1074, %v238
        %v1149 = vmul.f32 %v1079, %v239
        %v1150 = vmul.f32 %v1084, %v240
        %v1151 = vmul.f32 %v1089, %v241
        %v1152 = vmul.f32 %v1094, %v242
        %v1153 = vmul.f32 %v1099, %v243
        %v1154 = vmul.f32 %v1104, %v244
        %v1155 = vmul.f32 %v1109, %v245
        %v1156 = vmul.f32 %v1114, %v246
        %v1157 = vmul.f32 %v1119, %v247
        %v1158 = vmul.f32 %v1124, %v248
        %v1159 = vmul.f32 %v1129, %v249
        %v1160 = vmul.f32 %v1134, %v250
        %v1161 = vmul.f32 %v1139, %v251
        %v1162 = vmul.f32 %v1144, %v252
        %v1163 = vadd.f32 %v1147, %v1148
        %v1164 = vadd.f32 %v1163, %v1149
        %v1165 = vadd.f32 %v1164, %v1150
        %v1166 = vadd.f32 %v1165, %v1151
        %v1167 = vadd.f32 %v1166, %v1152
        %v1168 = vadd.f32 %v1167, %v1153
        %v1169 = vadd.f32 %v1168, %v1154
        %v1170 = vadd.f32 %v1169, %v1155
        %v1171 = vadd.f32 %v1170, %v1156
        %v1172 = vadd.f32 %v1171, %v1157
        %v1173 = vadd.f32 %v1172, %v1158
        %v1174 = vadd.f32 %v1173, %v1159
        %v1175 = vadd.f32 %v1174, %v1160
        %v1176 = vadd.f32 %v1175, %v1161
        %v1177 = vadd.f32 %v1176, %v1162
        %1178 = vadd.xlane.f32.xlu0 %v1177
        %v1179 = vpop.xlane.xlu0 %1178
        %v1180 = vrot.slane %v1179, 4
        %v1181 = vadd.f32 %v1179, %v1180
        %v1182 = vrot.slane %v1181, 2
        %v1183 = vadd.f32 %v1181, %v1182
        %v1184 = vrot.slane %v1183, 1
        %v1185 = vadd.f32 %v1183, %v1184
        %s1186 = vtos %v1185
        %v1187 = vstv %s1186
        %v1188 = vadd.f32 %v1187, 0.0
        %1189 = vst [vmem:[%s226] sm:$0x1] %v1188
        %s1190 = sand.u32 %s104, 1
        %s1191 = scalar_lea.sflag [#allocation4], %s1190
        %s1192 = sand.u32 %s104, 1
        %s1193 = smul.addr %s1192, 8
        %s1194 = scalar_lea.vmem [#allocation5], %s1193
        %s1195 = sand.u32 %s130, 1
        %s1196 = scalar_lea.sflag [#allocation7], %s1195
        %s1197 = sand.u32 %s130, 1
        %s1198 = scalar_lea.vmem [#allocation6], %s1197
        // Predicated region
        $region37: #{tpu_custom_call.1} parent=31 // pred_check
          %p1199 = pneg %p114
        $region38: #{tpu_custom_call.1} parent=31 // pred_check_branch
          %1201 = sbr.rel (%p1199) target = $region40
        $region39: #{tpu_custom_call.1} parent=31 // pred_region
          %s1203 = ssub.s32 128, 128
          %1204 = vsyncadd %s1191, %s1203
          %s1205 = smul.addr %s23, 128
          %s1206 = scalar_lea.hbm %s3, %s1205
          %s1208 = sshll.u32 %s1194, 4
          %s1209 = int_to_ptr.vmem [resolvable:$true] %s1208
          %1211 = dma.vmem_to_hbm [thread:$0]  %s1209, 128, %s1206, %s1191
        $region40: #{tpu_custom_call.1} parent=31 // pred_fallthru
          _
        // Predicated region
        $region41: #{tpu_custom_call.1} parent=31 // pred_check
          %p1212 = pneg %p140
        $region42: #{tpu_custom_call.1} parent=31 // pred_check_branch
          %1214 = sbr.rel (%p1212) target = $region44
        $region43: #{tpu_custom_call.1} parent=31 // pred_region
          %s1216 = ssub.s32 16, 16
          %1217 = vsyncadd %s1196, %s1216
          %s1218 = smul.addr %s23, 16
          %s1219 = scalar_lea.hbm %s4, %s1218
          %s1221 = sshll.u32 %s1198, 4
          %s1222 = int_to_ptr.vmem [resolvable:$true] %s1221
          %1224 = dma.vmem_to_hbm [thread:$0]  %s1222, 16, %s1219, %s1196
        $region44: #{tpu_custom_call.1} parent=31 // pred_fallthru
          _
      $region32: #{tpu_custom_call.1} parent=5 // pred_fallthru
        _
      %p1225 = scmp.le.s32.totalorder 2, %s18
      // Predicated region
      $region45: #{tpu_custom_call.1} parent=5 // pred_check
        %p1226 = pneg %p1225
      $region46: #{tpu_custom_call.1} parent=5 // pred_check_branch
        %1228 = sbr.rel (%p1226) target = $region48
      $region47: #{tpu_custom_call.1} parent=5 // pred_region
        %s1229 = ssub.s32 %s18, 2
        // Predicated region
        $region49: #{tpu_custom_call.1} parent=47 // pred_check
          %p1230 = pneg %p120
        $region50: #{tpu_custom_call.1} parent=47 // pred_check_branch
          %1232 = sbr.rel (%p1230) target = $region52
        $region51: #{tpu_custom_call.1} parent=47 // pred_region
          %s1233 = sand.u32 %s105, 1
          %s1234 = scalar_lea.sflag [#allocation4], %s1233
          %s1235 = sand.u32 %s105, 1
          %s1236 = smul.addr %s1235, 8
          %s1237 = scalar_lea.vmem [#allocation5], %s1236
          %1238 = dma.done %s1234, 128
        $region52: #{tpu_custom_call.1} parent=47 // pred_fallthru
          _
        // Predicated region
        $region53: #{tpu_custom_call.1} parent=47 // pred_check
          %p1239 = pneg %p146
        $region54: #{tpu_custom_call.1} parent=47 // pred_check_branch
          %1241 = sbr.rel (%p1239) target = $region56
        $region55: #{tpu_custom_call.1} parent=47 // pred_region
          %s1242 = sand.u32 %s131, 1
          %s1243 = scalar_lea.sflag [#allocation7], %s1242
          %s1244 = sand.u32 %s131, 1
          %s1245 = scalar_lea.vmem [#allocation6], %s1244
          %1246 = dma.done %s1243, 16
        $region56: #{tpu_custom_call.1} parent=47 // pred_fallthru
          _
      $region48: #{tpu_custom_call.1} parent=5 // pred_fallthru
        _
    $region6: #{tpu_custom_call.1} parent=1 // loop_footer
      %s22 = sadd.s32 1, %s18
    $region7: #{tpu_custom_call.1} parent=1 // loop_footer_branch
      %17 = sbr.rel target = $region3
    $region8: #{tpu_custom_call.1} parent=1 // loop_exit
      _
    %1247 = vsyncpa [#allocation3], 1
    %s1248 = scalar_lea.sflag [#allocation3], 1
    %1249 = vsyncpa %s1248, 1
    %1250 = vsyncpa [#allocation4], 1
    %s1251 = scalar_lea.sflag [#allocation4], 1
    %1252 = vsyncpa %s1251, 1
    %1253 = vsyncpa [#allocation7], 1
    %s1254 = scalar_lea.sflag [#allocation7], 1
    %1255 = vsyncpa %s1254, 1

</llo_original>
